<compile_context>
chip_gen: v5e
topology: v5e:2x2
jax: 0.10.0
libtpu: 0.0.40
codegen_flags: <defaults>
</compile_context>

<pallas_src>
import math

import jax
import jax.numpy as jnp
from jax.experimental import pallas as pl
from jax.experimental.pallas import tpu as pltpu


# ----------------------------------------------------------------------------- kernel
def _add_pe_kernel(x_ref, pe_ref, o_ref):
    # Single VPU add on lane-dense 2D tiles; pe tile is either the same shape as
    # the x tile (path 1) or (1, cols) which broadcasts over rows (path 2).
    o_ref[...] = (x_ref[...] + pe_ref[...]).astype(o_ref.dtype)


# ----------------------------------------------------------------------------- PE table
def make_position_encoding(num_patches: int, d_model: int) -> jnp.ndarray:
    """Deterministic sinusoidal PE, identical to the PyTorch __init__ (f32)."""
    position = jnp.arange(num_patches, dtype=jnp.float32)[:, None]            # (N, 1)
    div_term = jnp.exp(
        jnp.arange(0, d_model, 2, dtype=jnp.float32) * (-math.log(10000.0) / d_model)
    )                                                                          # (ceil(D/2),)
    angles = position * div_term                                               # (N, ceil(D/2))
    pe = jnp.zeros((num_patches, d_model), dtype=jnp.float32)
    pe = pe.at[:, 0::2].set(jnp.sin(angles)[:, : (d_model + 1) // 2])
    pe = pe.at[:, 1::2].set(jnp.cos(angles)[:, : d_model // 2])
    return pe                                                                  # (N, D)


# ----------------------------------------------------------------------------- tiling helper
def _largest_aligned_divisor(total: int, align: int, target: int) -> int:
    """Largest d with d % align == 0, total % d == 0 and d <= max(target, align).
    Returns 0 if `total` has no divisor that is a multiple of `align`."""
    if total % align != 0:
        return 0
    best = 0
    cap = min(total, max(target, align))
    d = align
    while d <= cap:
        if total % d == 0:
            best = d
        d += align
    return best


# ----------------------------------------------------------------------------- wrapper
def position_encoding_forward(x: jnp.ndarray, pe: jnp.ndarray,
                              donate_x: bool = False) -> jnp.ndarray:
    """x: (B, num_patches, d_model);  pe: (num_patches, d_model)."""
    B, N, D = x.shape
    assert pe.shape == (N, D)

    pe = pe.astype(x.dtype)                     # cast once in the wrapper (bf16-safe)
    itemsize = jnp.dtype(x.dtype).itemsize
    compiler_kwargs = dict(vmem_limit_bytes=32 * 1024 * 1024)
    alias = {0: 0} if donate_x else {}

    # ---- Path 1: D already lane-dense; tile rows of the flattened (B*N, D) view,
    #      PE tiled along N and reused across the (inner) batch axis.
    if D % 128 == 0 and N % 8 == 0:
        target_rows = max(8, (1 << 20) // max(1, D * itemsize))   # ~1 MiB / buffer
        tn = _largest_aligned_divisor(N, 8, target_rows)
        if tn > 0:
            x2 = x.reshape(B * N, D)
            n_blocks = N // tn
            out2 = pl.pallas_call(
                _add_pe_kernel,
                out_shape=jax.ShapeDtypeStruct((B * N, D), x.dtype),
                grid=(n_blocks, B),                     # N-tile outer, batch inner
                in_specs=[
                    pl.BlockSpec((tn, D), lambda nt, b: (b * (N // tn) + nt, 0)),
                    pl.BlockSpec((tn, D), lambda nt, b: (nt, 0)),   # PE reused over b
                ],
                out_specs=pl.BlockSpec((tn, D), lambda nt, b: (b * (N // tn) + nt, 0)),
                compiler_params=pltpu.CompilerParams(
                    dimension_semantics=("parallel", "parallel"),
                    **compiler_kwargs,
                ),
                input_output_aliases=alias,
            )(x2, pe)
            return out2.reshape(B, N, D)

    # ---- Path 2 (fallback, incl. D < 128): fold N into the lane axis so stores
    #      are lane-dense; PE becomes a single broadcast row of length N*D.
    NK = N * D
    x2 = x.reshape(B, NK)
    pe2 = pe.reshape(1, NK)

    target_rows = max(8, (2 << 20) // max(1, NK * itemsize))
    tb = _largest_aligned_divisor(B, 8, target_rows)
    if tb == 0:
        tb = B                                          # full-dim block is always legal
    target_cols = max(128, (1 << 20) // max(1, tb * itemsize))
    tc = _largest_aligned_divisor(NK, 128, target_cols)
    if tc == 0:
        tc = NK                                         # full-dim lane block is legal

    out2 = pl.pallas_call(
        _add_pe_kernel,
        out_shape=jax.ShapeDtypeStruct((B, NK), x.dtype),
        grid=(NK // tc, B // tb),                       # PE-varying axis outer
        in_specs=[
            pl.BlockSpec((tb, tc), lambda j, i: (i, j)),
            pl.BlockSpec((1, tc), lambda j, i: (0, j)),
        ],
        out_specs=pl.BlockSpec((tb, tc), lambda j, i: (i, j)),
        compiler_params=pltpu.CompilerParams(
            dimension_semantics=("parallel", "parallel"),
            **compiler_kwargs,
        ),
        input_output_aliases=alias,
    )(x2, pe2)
    return out2.reshape(B, N, D)


# ----------------------------------------------------------------------------- demo / check
if __name__ == "__main__":
    key = jax.random.PRNGKey(0)

    # Shapes consistent with the module: batch=2, num_patches=8, d_model=32
    # (exercises the lane-folding fallback path, output lane width = 256).
    B, N, D = 2, 8, 32
    x = jax.random.normal(key, (B, N, D), dtype=jnp.float32)
    pe = make_position_encoding(N, D)
    out = jax.block_until_ready(position_encoding_forward(x, pe))
    ref = x + pe[None, :, :]
    assert out.shape == (B, N, D)
    assert jnp.allclose(out, ref, atol=1e-6), "mismatch vs reference (path 2)"

    # Small sanity check of the lane-dense row-tiled path (D multiple of 128).
    B2, N2, D2 = 2, 16, 128
    x2 = jax.random.normal(jax.random.PRNGKey(1), (B2, N2, D2), dtype=jnp.float32)
    pe2 = make_position_encoding(N2, D2)
    out2 = jax.block_until_ready(position_encoding_forward(x2, pe2))
    ref2 = x2 + pe2[None, :, :]
    assert jnp.allclose(out2, ref2, atol=1e-6), "mismatch vs reference (path 1)"

    print("KERNEL_OK")
</pallas_src>

<mosaic_0001>
module attributes {stable_mosaic.version = 11 : i64} {
  func.func @_add_pe_kernel(%arg0: i32, %arg1: i32, %arg2: memref<2x256xf32, #tpu.memory_space<vmem>>, %arg3: memref<1x256xf32, #tpu.memory_space<vmem>>, %arg4: memref<2x256xf32, #tpu.memory_space<vmem>>) attributes {dimension_semantics = [#tpu.dimension_semantics<parallel>, #tpu.dimension_semantics<parallel>], iteration_bounds = array<i64: 1, 1>, scalar_prefetch = 0 : i64, scratch_operands = 0 : i64, tpu.core_type = #tpu.core_type<tc>, window_params = [{transform_indices = @transform_0, window_bounds = array<i64: 2, 256>}, {transform_indices = @transform_1, window_bounds = array<i64: 1, 256>}, {transform_indices = @transform_2, window_bounds = array<i64: 2, 256>}]} {
    %c0 = arith.constant 0 : index
    %c0_0 = arith.constant 0 : index
    %0 = vector.load %arg2[%c0, %c0_0] : memref<2x256xf32, #tpu.memory_space<vmem>>, vector<2x256xf32>
    %c0_1 = arith.constant 0 : index
    %c0_2 = arith.constant 0 : index
    %1 = vector.load %arg3[%c0_1, %c0_2] : memref<1x256xf32, #tpu.memory_space<vmem>>, vector<1x256xf32>
    %2 = vector.broadcast %1 : vector<1x256xf32> to vector<2x256xf32>
    %3 = arith.addf %0, %2 : vector<2x256xf32>
    %c0_3 = arith.constant 0 : index
    %c0_4 = arith.constant 0 : index
    %4 = vector.load %arg4[%c0_3, %c0_4] : memref<2x256xf32, #tpu.memory_space<vmem>>, vector<2x256xf32>
    tpu.vector_store %arg4[%c0_3, %c0_4], %3 {strides = array<i32>} : memref<2x256xf32, #tpu.memory_space<vmem>>, vector<2x256xf32>,
    return
  }
  func.func @transform_0(%arg0: i32, %arg1: i32) -> (i32, i32) {
    %c0_i32 = arith.constant 0 : i32
    return %arg1, %arg0 : i32, i32
  }
  func.func @transform_1(%arg0: i32, %arg1: i32) -> (i32, i32) {
    %c0_i32 = arith.constant 0 : i32
    %c0_i32_0 = arith.constant 0 : i32
    return %c0_i32, %arg0 : i32, i32
  }
  func.func @transform_2(%arg0: i32, %arg1: i32) -> (i32, i32) {
    %c0_i32 = arith.constant 0 : i32
    return %arg1, %arg0 : i32, i32
  }
}

</mosaic_0001>

<llo_original>
// kernel: tpu_custom_call.1
$region0: #{tpu_custom_call.1}
  #allocation0 [shape = 'u32[]', space=smem, size = 0x4, offset = 0x4, fixed_abs, tag = 'smem constant byte address 0x4 - core index']
  #allocation1 [shape = 'u32[72,128]{1,0:T(1,128)}', space=vmem, size = 0x9000, scoped, tag = 'internal scratch']
  %s0 = inlined_call_operand.hbm [shape: f32[2,256], index: 0, kind: input, shape index: {}]
  %s1 = inlined_call_operand.hbm [shape: f32[1,256], index: 1, kind: input, shape index: {}]
  %s2 = inlined_call_operand.hbm [shape: f32[2,256], index: 2, kind: output, shape index: {}]
  %s3 = sld [smem:[#allocation0]]
  $region26: #{tpu_custom_call.1} parent=0
    _
  %s5 = ssub.s32 1, %s3
  %s6 = scalar_select 0, %s5, %s3
  $region1: #{tpu_custom_call.1} parent=0
    #allocation2 [shape = 'u8[2048]{0}', space=vmem, size = 0x800, scoped, tag = 'input window, operand 0, single buffered']
    #allocation3 [shape = 's32[1]{0}', space=sflag, size = 0x4, scoped, tag = 'scoped memory for tpu_custom_call.1']
    #allocation4 [shape = 's32[1]{0}', space=sflag, size = 0x4, scoped, tag = 'scoped memory for tpu_custom_call.1']
    #allocation5 [shape = 'u8[1024]{0}', space=vmem, size = 0x400, scoped, tag = 'input window, operand 1, single buffered']
    #allocation6 [shape = 's32[1]{0}', space=sflag, size = 0x4, scoped, tag = 'scoped memory for tpu_custom_call.1']
    #allocation7 [shape = 'u8[2048]{0}', space=vmem, size = 0x800, scoped, tag = 'output window, operand 0, single buffered']
    %7 = vsyncpa [#allocation3], 0
    %8 = vsyncpa [#allocation6], 0
    %9 = vsyncpa [#allocation4], 0
    // Predicated region
    $region2: #{tpu_custom_call.1} parent=1 // pred_check
      _
    $region3: #{tpu_custom_call.1} parent=1 // pred_check_branch
      %11 = sbr.rel (0) target = $region5
    $region4: #{tpu_custom_call.1} parent=1 // pred_region
      %13 = vsyncadd [#allocation3], 0
      %s15 = sshll.u32 %s0, 4
      %s16 = int_to_ptr.hbm [resolvable:$true] %s15
      %s17 = sshll.u32 [#allocation2], 4
      %s18 = int_to_ptr.vmem [resolvable:$true] %s17
      %20 = dma.hbm_to_vmem [thread:$0]  %s16, 64, %s18, [#allocation3]
    $region5: #{tpu_custom_call.1} parent=1 // pred_fallthru
      _
    // Predicated region
    $region6: #{tpu_custom_call.1} parent=1 // pred_check
      _
    $region7: #{tpu_custom_call.1} parent=1 // pred_check_branch
      %22 = sbr.rel (0) target = $region9
    $region8: #{tpu_custom_call.1} parent=1 // pred_region
      %24 = vsyncadd [#allocation6], 0
      %s26 = sshll.u32 %s1, 4
      %s27 = int_to_ptr.hbm [resolvable:$true] %s26
      %s28 = sshll.u32 [#allocation5], 4
      %s29 = int_to_ptr.vmem [resolvable:$true] %s28
      %31 = dma.hbm_to_vmem [thread:$0]  %s27, 32, %s29, [#allocation6]
    $region9: #{tpu_custom_call.1} parent=1 // pred_fallthru
      _
    // Predicated region
    $region10: #{tpu_custom_call.1} parent=1 // pred_check
      _
    $region11: #{tpu_custom_call.1} parent=1 // pred_check_branch
      %33 = sbr.rel (0) target = $region13
    $region12: #{tpu_custom_call.1} parent=1 // pred_region
      %35 = dma.done [#allocation3], 64
    $region13: #{tpu_custom_call.1} parent=1 // pred_fallthru
      _
    // Predicated region
    $region14: #{tpu_custom_call.1} parent=1 // pred_check
      _
    $region15: #{tpu_custom_call.1} parent=1 // pred_check_branch
      %37 = sbr.rel (0) target = $region17
    $region16: #{tpu_custom_call.1} parent=1 // pred_region
      %39 = dma.done [#allocation6], 32
    $region17: #{tpu_custom_call.1} parent=1 // pred_fallthru
      _
    %v40 = vld [vmem:[#allocation2] sm:$0xf]
    %v41 = vld [vmem:[#allocation5] sm:$0x3]
    %v43 = vperm.slane %v41, 0
    %v44 = vperm.slane %v41, 1
    %v45 = vrot.slane %v44, 6
    %vm46 = vcmask 1041408
    %v47 = vsel %vm46, %v43, %v45
    %v49 = vadd.f32 %v40, %v47
    %50 = vst [vmem:[#allocation7] sm:$0xf] %v49
    // Predicated region
    $region18: #{tpu_custom_call.1} parent=1 // pred_check
      _
    $region19: #{tpu_custom_call.1} parent=1 // pred_check_branch
      %52 = sbr.rel (0) target = $region21
    $region20: #{tpu_custom_call.1} parent=1 // pred_region
      %54 = vsyncadd [#allocation4], 0
      %s56 = sshll.u32 [#allocation7], 4
      %s57 = int_to_ptr.vmem [resolvable:$true] %s56
      %s58 = sshll.u32 %s2, 4
      %s59 = int_to_ptr.hbm [resolvable:$true] %s58
      %61 = dma.vmem_to_hbm [thread:$0]  %s57, 64, %s59, [#allocation4]
    $region21: #{tpu_custom_call.1} parent=1 // pred_fallthru
      _
    // Predicated region
    $region22: #{tpu_custom_call.1} parent=1 // pred_check
      _
    $region23: #{tpu_custom_call.1} parent=1 // pred_check_branch
      %63 = sbr.rel (0) target = $region25
    $region24: #{tpu_custom_call.1} parent=1 // pred_region
      %65 = dma.done [#allocation4], 64
    $region25: #{tpu_custom_call.1} parent=1 // pred_fallthru
      _
    %66 = vsyncpa [#allocation3], 1
    %67 = vsyncpa [#allocation6], 1
    %68 = vsyncpa [#allocation4], 1

</llo_original>
